<compile_context>
chip_gen: v6e
topology: v6e:2x2x1
jax: 0.10.0
libtpu: 0.0.40
codegen_flags: <defaults>
</compile_context>

<pallas_src>
import math

import jax
import jax.numpy as jnp
from jax.experimental import pallas as pl
from jax.experimental.pallas import tpu as pltpu


def _sphere_kernel(x_ref, w1_ref, b1_ref, w2_ref, b2_ref, w3_ref, b3_ref,
                   scale_ref, out_ref):
    # MLP: Linear -> ReLU -> Linear -> ReLU -> Linear   (all f32 accumulation)
    x = x_ref[...]                                                     # (TB, dim_in)
    h1 = jnp.maximum(
        jnp.dot(x, w1_ref[...], preferred_element_type=jnp.float32) + b1_ref[...],
        0.0)
    h2 = jnp.maximum(
        jnp.dot(h1, w2_ref[...], preferred_element_type=jnp.float32) + b2_ref[...],
        0.0)
    o = jnp.dot(h2, w3_ref[...], preferred_element_type=jnp.float32) + b3_ref[...]
    # Epilogue in one pass: tanh then per-column scale
    #   theta cols: tanh * pi ; phi cols: tanh * pi/2 (== tanh*pi/2 - pi/2 + pi/2)
    out_ref[...] = jnp.tanh(o) * scale_ref[...]


def _round_up(x, m):
    return ((x + m - 1) // m) * m


class SphereSurfaceModelPallas:
    def __init__(self, s_dim, output_dim, latent_dim,
                 include_s_recon_terms=True, hidden_units=64, key=None):
        self.s_dim = s_dim
        self.output_dim = output_dim
        self.latent_dim = latent_dim
        self.include_s_recon_terms = include_s_recon_terms
        dim_in = 2 * s_dim + latent_dim if include_s_recon_terms else 2 + latent_dim
        dim_out = 2 * output_dim * s_dim if include_s_recon_terms else 2 * output_dim
        self.dim_in = dim_in
        self.dim_out = dim_out
        self.hidden_units = hidden_units
        self.divide_point = (output_dim * s_dim) if include_s_recon_terms else output_dim

        if key is None:
            key = jax.random.PRNGKey(0)
        keys = jax.random.split(key, 6)

        def init_linear(kw, kb, fan_in, fan_out):
            # PyTorch-Linear-style uniform init U(-1/sqrt(fan_in), 1/sqrt(fan_in));
            # stored as (in, out) so the kernel computes x @ W + b.
            bound = 1.0 / math.sqrt(fan_in)
            w = jax.random.uniform(kw, (fan_in, fan_out), jnp.float32, -bound, bound)
            b = jax.random.uniform(kb, (1, fan_out), jnp.float32, -bound, bound)
            return w, b

        self.w1, self.b1 = init_linear(keys[0], keys[1], dim_in, hidden_units)
        self.w2, self.b2 = init_linear(keys[2], keys[3], hidden_units, hidden_units)
        self.w3, self.b3 = init_linear(keys[4], keys[5], hidden_units, dim_out)

        # Hoisted per-column scale row: pi for theta columns, pi/2 for phi columns.
        dp = self.divide_point
        self.col_scale = jnp.concatenate(
            [jnp.full((1, dp), math.pi, jnp.float32),
             jnp.full((1, dim_out - dp), math.pi / 2.0, jnp.float32)],
            axis=1)

    def __call__(self, i, block_rows=1024):
        batch = i.shape[0]
        x = i.reshape(-1, self.dim_in).astype(jnp.float32)
        B = x.shape[0]
        h = self.hidden_units
        d_in, d_out = self.dim_in, self.dim_out

        # Row block: multiple of 8 sublanes, clamped for small batches; pad the
        # batch up to a multiple of the block so every grid step is full.
        tb = min(block_rows, _round_up(B, 8))
        Bp = _round_up(B, tb)
        if Bp != B:
            x = jnp.pad(x, ((0, Bp - B), (0, 0)))
        grid = (Bp // tb,)

        cost = pl.CostEstimate(
            flops=2 * Bp * (d_in * h + h * h + h * d_out) + 4 * Bp * (2 * h + d_out),
            transcendentals=Bp * d_out,
            bytes_accessed=4 * (Bp * d_in + Bp * d_out
                                + d_in * h + h * h + h * d_out
                                + 2 * h + 2 * d_out),
        )

        out = pl.pallas_call(
            _sphere_kernel,
            out_shape=jax.ShapeDtypeStruct((Bp, d_out), jnp.float32),
            grid=grid,
            in_specs=[
                pl.BlockSpec((tb, d_in), lambda b: (b, 0)),          # x: row-blocked
                pl.BlockSpec(self.w1.shape, lambda b: (0, 0)),       # weights/biases:
                pl.BlockSpec(self.b1.shape, lambda b: (0, 0)),       #   VMEM-resident
                pl.BlockSpec(self.w2.shape, lambda b: (0, 0)),
                pl.BlockSpec(self.b2.shape, lambda b: (0, 0)),
                pl.BlockSpec(self.w3.shape, lambda b: (0, 0)),
                pl.BlockSpec(self.b3.shape, lambda b: (0, 0)),
                pl.BlockSpec(self.col_scale.shape, lambda b: (0, 0)),
            ],
            out_specs=pl.BlockSpec((tb, d_out), lambda b: (b, 0)),   # one dense output
            compiler_params=pltpu.CompilerParams(
                dimension_semantics=("parallel",),
                vmem_limit_bytes=32 * 1024 * 1024,
            ),
            cost_estimate=cost,
        )(x, self.w1, self.b1, self.w2, self.b2, self.w3, self.b3, self.col_scale)

        out = out[:B]
        dp = self.divide_point
        theta = out[:, :dp].reshape(batch, 1, -1)
        phi = out[:, dp:].reshape(batch, 1, -1)
        return theta, phi


def _reference_forward(model, i):
    # Pure-JAX reference matching the PyTorch expression exactly.
    x = i.reshape(-1, model.dim_in).astype(jnp.float32)
    h1 = jnp.maximum(x @ model.w1 + model.b1, 0.0)
    h2 = jnp.maximum(h1 @ model.w2 + model.b2, 0.0)
    out = h2 @ model.w3 + model.b3
    pi = math.pi
    phi_scale = pi  # phi_max - phi_min
    dp = model.divide_point
    theta = jnp.tanh(out[:, :dp]) * pi
    phi = jnp.tanh(out[:, dp:]) * phi_scale / 2.0 - pi / 2.0 + phi_scale / 2.0
    return theta.reshape(i.shape[0], 1, -1), phi.reshape(i.shape[0], 1, -1)


if __name__ == "__main__":
    # Small shapes consistent with the module:
    #   s_dim=3, output_dim=2, latent_dim=4, include_s_recon_terms=True, hidden=32
    #   -> dim_in = 2*3+4 = 10, dim_out = 2*2*3 = 12, divide_point = 6
    s_dim, output_dim, latent_dim, hidden = 3, 2, 4, 32
    model = SphereSurfaceModelPallas(s_dim, output_dim, latent_dim,
                                     include_s_recon_terms=True,
                                     hidden_units=hidden,
                                     key=jax.random.PRNGKey(0))

    batch = 10  # deliberately not a multiple of 8 to exercise the padded tail path
    x = jax.random.normal(jax.random.PRNGKey(0), (batch, model.dim_in), jnp.float32)

    theta, phi = model(x)
    theta = jax.block_until_ready(theta)
    phi = jax.block_until_ready(phi)

    theta_ref, phi_ref = _reference_forward(model, x)
    assert theta.shape == (batch, 1, model.divide_point)
    assert phi.shape == (batch, 1, model.dim_out - model.divide_point)
    assert jnp.allclose(theta, theta_ref, atol=1e-5, rtol=1e-5)
    assert jnp.allclose(phi, phi_ref, atol=1e-5, rtol=1e-5)

    print("KERNEL_OK")
</pallas_src>

<mosaic_0001>
module attributes {stable_mosaic.version = 11 : i64} {
  func.func @_sphere_kernel(%arg0: i32, %arg1: memref<16x10xf32, #tpu.memory_space<vmem>>, %arg2: memref<10x32xf32, #tpu.memory_space<vmem>>, %arg3: memref<1x32xf32, #tpu.memory_space<vmem>>, %arg4: memref<32x32xf32, #tpu.memory_space<vmem>>, %arg5: memref<1x32xf32, #tpu.memory_space<vmem>>, %arg6: memref<32x12xf32, #tpu.memory_space<vmem>>, %arg7: memref<1x12xf32, #tpu.memory_space<vmem>>, %arg8: memref<1x12xf32, #tpu.memory_space<vmem>>, %arg9: memref<16x12xf32, #tpu.memory_space<vmem>>) attributes {dimension_semantics = [#tpu.dimension_semantics<parallel>], iteration_bounds = array<i64: 1>, scalar_prefetch = 0 : i64, scratch_operands = 0 : i64, tpu.core_type = #tpu.core_type<tc>, window_params = [{transform_indices = @transform_0, window_bounds = array<i64: 16, 10>}, {pipeline_mode = #tpu.pipeline_mode<synchronous>, transform_indices = @transform_1, window_bounds = array<i64: 10, 32>}, {pipeline_mode = #tpu.pipeline_mode<synchronous>, transform_indices = @transform_2, window_bounds = array<i64: 1, 32>}, {pipeline_mode = #tpu.pipeline_mode<synchronous>, transform_indices = @transform_3, window_bounds = array<i64: 32, 32>}, {pipeline_mode = #tpu.pipeline_mode<synchronous>, transform_indices = @transform_4, window_bounds = array<i64: 1, 32>}, {pipeline_mode = #tpu.pipeline_mode<synchronous>, transform_indices = @transform_5, window_bounds = array<i64: 32, 12>}, {pipeline_mode = #tpu.pipeline_mode<synchronous>, transform_indices = @transform_6, window_bounds = array<i64: 1, 12>}, {pipeline_mode = #tpu.pipeline_mode<synchronous>, transform_indices = @transform_7, window_bounds = array<i64: 1, 12>}, {transform_indices = @transform_8, window_bounds = array<i64: 16, 12>}]} {
    %c0 = arith.constant 0 : index
    %c0_0 = arith.constant 0 : index
    %0 = vector.load %arg1[%c0, %c0_0] : memref<16x10xf32, #tpu.memory_space<vmem>>, vector<16x10xf32>
    %c0_1 = arith.constant 0 : index
    %c0_2 = arith.constant 0 : index
    %1 = vector.load %arg2[%c0_1, %c0_2] : memref<10x32xf32, #tpu.memory_space<vmem>>, vector<10x32xf32>
    %cst = arith.constant dense<0.000000e+00> : vector<16x32xf32>
    %2 = tpu.matmul %0, %1, %cst {dimension_numbers = #tpu.dot_dimension_numbers<[1], [0], [0], [1], [0, 0, 1, 1], [], []>} : vector<16x10xf32>, vector<10x32xf32>, vector<16x32xf32> -> vector<16x32xf32>
    %c0_3 = arith.constant 0 : index
    %c0_4 = arith.constant 0 : index
    %3 = vector.load %arg3[%c0_3, %c0_4] : memref<1x32xf32, #tpu.memory_space<vmem>>, vector<1x32xf32>
    %4 = vector.broadcast %3 : vector<1x32xf32> to vector<16x32xf32>
    %5 = arith.addf %2, %4 : vector<16x32xf32>
    %cst_5 = arith.constant 0.000000e+00 : f32
    %6 = vector.broadcast %cst_5 : f32 to vector<16x32xf32>
    %7 = arith.maximumf %5, %6 : vector<16x32xf32>
    %c0_6 = arith.constant 0 : index
    %c0_7 = arith.constant 0 : index
    %8 = vector.load %arg4[%c0_6, %c0_7] : memref<32x32xf32, #tpu.memory_space<vmem>>, vector<32x32xf32>
    %cst_8 = arith.constant dense<0.000000e+00> : vector<16x32xf32>
    %9 = tpu.matmul %7, %8, %cst_8 {dimension_numbers = #tpu.dot_dimension_numbers<[1], [0], [0], [1], [0, 0, 1, 1], [], []>} : vector<16x32xf32>, vector<32x32xf32>, vector<16x32xf32> -> vector<16x32xf32>
    %c0_9 = arith.constant 0 : index
    %c0_10 = arith.constant 0 : index
    %10 = vector.load %arg5[%c0_9, %c0_10] : memref<1x32xf32, #tpu.memory_space<vmem>>, vector<1x32xf32>
    %11 = vector.broadcast %10 : vector<1x32xf32> to vector<16x32xf32>
    %12 = arith.addf %9, %11 : vector<16x32xf32>
    %cst_11 = arith.constant 0.000000e+00 : f32
    %13 = vector.broadcast %cst_11 : f32 to vector<16x32xf32>
    %14 = arith.maximumf %12, %13 : vector<16x32xf32>
    %c0_12 = arith.constant 0 : index
    %c0_13 = arith.constant 0 : index
    %15 = vector.load %arg6[%c0_12, %c0_13] : memref<32x12xf32, #tpu.memory_space<vmem>>, vector<32x12xf32>
    %cst_14 = arith.constant dense<0.000000e+00> : vector<16x12xf32>
    %16 = tpu.matmul %14, %15, %cst_14 {dimension_numbers = #tpu.dot_dimension_numbers<[1], [0], [0], [1], [0, 0, 1, 1], [], []>} : vector<16x32xf32>, vector<32x12xf32>, vector<16x12xf32> -> vector<16x12xf32>
    %c0_15 = arith.constant 0 : index
    %c0_16 = arith.constant 0 : index
    %17 = vector.load %arg7[%c0_15, %c0_16] : memref<1x12xf32, #tpu.memory_space<vmem>>, vector<1x12xf32>
    %18 = vector.broadcast %17 : vector<1x12xf32> to vector<16x12xf32>
    %19 = arith.addf %16, %18 : vector<16x12xf32>
    %20 = math.tanh %19 : vector<16x12xf32>
    %c0_17 = arith.constant 0 : index
    %c0_18 = arith.constant 0 : index
    %21 = vector.load %arg8[%c0_17, %c0_18] : memref<1x12xf32, #tpu.memory_space<vmem>>, vector<1x12xf32>
    %22 = vector.broadcast %21 : vector<1x12xf32> to vector<16x12xf32>
    %23 = arith.mulf %20, %22 : vector<16x12xf32>
    %c0_19 = arith.constant 0 : index
    %c0_20 = arith.constant 0 : index
    %24 = vector.load %arg9[%c0_19, %c0_20] : memref<16x12xf32, #tpu.memory_space<vmem>>, vector<16x12xf32>
    tpu.vector_store %arg9[%c0_19, %c0_20], %23 {strides = array<i32>} : memref<16x12xf32, #tpu.memory_space<vmem>>, vector<16x12xf32>,
    return
  }
  func.func @transform_0(%arg0: i32) -> (i32, i32) {
    %c0_i32 = arith.constant 0 : i32
    %c0_i32_0 = arith.constant 0 : i32
    return %arg0, %c0_i32 : i32, i32
  }
  func.func @transform_1(%arg0: i32) -> (i32, i32) {
    %c0_i32 = arith.constant 0 : i32
    %c0_i32_0 = arith.constant 0 : i32
    %c0_i32_1 = arith.constant 0 : i32
    return %c0_i32, %c0_i32_0 : i32, i32
  }
  func.func @transform_2(%arg0: i32) -> (i32, i32) {
    %c0_i32 = arith.constant 0 : i32
    %c0_i32_0 = arith.constant 0 : i32
    %c0_i32_1 = arith.constant 0 : i32
    return %c0_i32, %c0_i32_0 : i32, i32
  }
  func.func @transform_3(%arg0: i32) -> (i32, i32) {
    %c0_i32 = arith.constant 0 : i32
    %c0_i32_0 = arith.constant 0 : i32
    %c0_i32_1 = arith.constant 0 : i32
    return %c0_i32, %c0_i32_0 : i32, i32
  }
  func.func @transform_4(%arg0: i32) -> (i32, i32) {
    %c0_i32 = arith.constant 0 : i32
    %c0_i32_0 = arith.constant 0 : i32
    %c0_i32_1 = arith.constant 0 : i32
    return %c0_i32, %c0_i32_0 : i32, i32
  }
  func.func @transform_5(%arg0: i32) -> (i32, i32) {
    %c0_i32 = arith.constant 0 : i32
    %c0_i32_0 = arith.constant 0 : i32
    %c0_i32_1 = arith.constant 0 : i32
    return %c0_i32, %c0_i32_0 : i32, i32
  }
  func.func @transform_6(%arg0: i32) -> (i32, i32) {
    %c0_i32 = arith.constant 0 : i32
    %c0_i32_0 = arith.constant 0 : i32
    %c0_i32_1 = arith.constant 0 : i32
    return %c0_i32, %c0_i32_0 : i32, i32
  }
  func.func @transform_7(%arg0: i32) -> (i32, i32) {
    %c0_i32 = arith.constant 0 : i32
    %c0_i32_0 = arith.constant 0 : i32
    %c0_i32_1 = arith.constant 0 : i32
    return %c0_i32, %c0_i32_0 : i32, i32
  }
  func.func @transform_8(%arg0: i32) -> (i32, i32) {
    %c0_i32 = arith.constant 0 : i32
    %c0_i32_0 = arith.constant 0 : i32
    return %arg0, %c0_i32 : i32, i32
  }
}

</mosaic_0001>

<llo_original>
// kernel: tpu_custom_call.1
$region0: #{tpu_custom_call.1}
  #allocation0 [shape = 'u32[]', space=smem, size = 0x4, offset = 0x4, fixed_abs, tag = 'smem constant byte address 0x4 - core index']
  #allocation1 [shape = 'u32[144,128]{1,0:T(1,128)}', space=vmem, size = 0x12000, scoped, tag = 'internal scratch']
  %s0 = inlined_call_operand.vmem [shape: f32[16,10], index: 0, kind: input, shape index: {}]
  %s1 = inlined_call_operand.hbm [shape: f32[10,32], index: 1, kind: input, shape index: {}]
  %s2 = inlined_call_operand.vmem [shape: f32[1,32], index: 2, kind: input, shape index: {}]
  %s3 = inlined_call_operand.vmem [shape: f32[32,32], index: 3, kind: input, shape index: {}]
  %s4 = inlined_call_operand.vmem [shape: f32[1,32], index: 4, kind: input, shape index: {}]
  %s5 = inlined_call_operand.vmem [shape: f32[32,12], index: 5, kind: input, shape index: {}]
  %s6 = inlined_call_operand.vmem [shape: f32[1,12], index: 6, kind: input, shape index: {}]
  %s7 = inlined_call_operand.vmem [shape: f32[1,12], index: 7, kind: input, shape index: {}]
  %s8 = inlined_call_operand.hbm [shape: f32[16,12], index: 8, kind: output, shape index: {}]
  %s9 = sld [smem:[#allocation0]]
  $region46: #{tpu_custom_call.1} parent=0
    _
  %s11 = ssub.s32 1, %s9
  %s12 = scalar_select 0, %s11, %s9
  $region1: #{tpu_custom_call.1} parent=0
    #allocation2 [shape = 'u8[8192]{0}', space=vmem, size = 0x2000, scoped, tag = 'input window, operand 1, single buffered']
    #allocation3 [shape = 's32[1]{0}', space=sflag, size = 0x4, scoped, tag = 'scoped memory for tpu_custom_call.1']
    #allocation4 [shape = 's32[1]{0}', space=sflag, size = 0x4, scoped, tag = 'scoped memory for tpu_custom_call.1']
    #allocation5 [shape = 'u8[8192]{0}', space=vmem, size = 0x2000, scoped, tag = 'output window, operand 0, single buffered']
    %13 = vsyncpa [#allocation3], 0
    %14 = vsyncpa [#allocation4], 0
    // Predicated region
    $region2: #{tpu_custom_call.1} parent=1 // pred_check
      _
    $region3: #{tpu_custom_call.1} parent=1 // pred_check_branch
      %16 = sbr.rel (0) target = $region5
    $region4: #{tpu_custom_call.1} parent=1 // pred_region
      _
    $region5: #{tpu_custom_call.1} parent=1 // pred_fallthru
      _
    // Predicated region
    $region6: #{tpu_custom_call.1} parent=1 // pred_check
      _
    $region7: #{tpu_custom_call.1} parent=1 // pred_check_branch
      %18 = sbr.rel (0) target = $region9
    $region8: #{tpu_custom_call.1} parent=1 // pred_region
      %s20 = ssub.s32 256, 256
      %21 = vsyncadd [#allocation3], %s20
      %s22 = sshll.u32 [#allocation2], 4
      %s23 = int_to_ptr.vmem [resolvable:$true] %s22
      %28 = dma.hbm_to_vmem [thread:$0]  %s1, 256, %s23, [#allocation3], 128, 128, 8
    $region9: #{tpu_custom_call.1} parent=1 // pred_fallthru
      _
    // Predicated region
    $region10: #{tpu_custom_call.1} parent=1 // pred_check
      _
    $region11: #{tpu_custom_call.1} parent=1 // pred_check_branch
      %30 = sbr.rel (0) target = $region13
    $region12: #{tpu_custom_call.1} parent=1 // pred_region
      _
    $region13: #{tpu_custom_call.1} parent=1 // pred_fallthru
      _
    // Predicated region
    $region14: #{tpu_custom_call.1} parent=1 // pred_check
      _
    $region15: #{tpu_custom_call.1} parent=1 // pred_check_branch
      %32 = sbr.rel (0) target = $region17
    $region16: #{tpu_custom_call.1} parent=1 // pred_region
      _
    $region17: #{tpu_custom_call.1} parent=1 // pred_fallthru
      _
    // Predicated region
    $region18: #{tpu_custom_call.1} parent=1 // pred_check
      _
    $region19: #{tpu_custom_call.1} parent=1 // pred_check_branch
      %34 = sbr.rel (0) target = $region21
    $region20: #{tpu_custom_call.1} parent=1 // pred_region
      _
    $region21: #{tpu_custom_call.1} parent=1 // pred_fallthru
      _
    // Predicated region
    $region22: #{tpu_custom_call.1} parent=1 // pred_check
      _
    $region23: #{tpu_custom_call.1} parent=1 // pred_check_branch
      %36 = sbr.rel (0) target = $region25
    $region24: #{tpu_custom_call.1} parent=1 // pred_region
      _
    $region25: #{tpu_custom_call.1} parent=1 // pred_fallthru
      _
    // Predicated region
    $region26: #{tpu_custom_call.1} parent=1 // pred_check
      _
    $region27: #{tpu_custom_call.1} parent=1 // pred_check_branch
      %38 = sbr.rel (0) target = $region29
    $region28: #{tpu_custom_call.1} parent=1 // pred_region
      _
    $region29: #{tpu_custom_call.1} parent=1 // pred_fallthru
      _
    // Predicated region
    $region30: #{tpu_custom_call.1} parent=1 // pred_check
      _
    $region31: #{tpu_custom_call.1} parent=1 // pred_check_branch
      %40 = sbr.rel (0) target = $region33
    $region32: #{tpu_custom_call.1} parent=1 // pred_region
      _
    $region33: #{tpu_custom_call.1} parent=1 // pred_fallthru
      _
    // Predicated region
    $region34: #{tpu_custom_call.1} parent=1 // pred_check
      _
    $region35: #{tpu_custom_call.1} parent=1 // pred_check_branch
      %42 = sbr.rel (0) target = $region37
    $region36: #{tpu_custom_call.1} parent=1 // pred_region
      %43 = dma.done [#allocation3], 256
    $region37: #{tpu_custom_call.1} parent=1 // pred_fallthru
      _
    %v44 = vld [vmem:[%s0] sm:$0xff]
    %v45 = vld [vmem:[%s0 + $0x8] sm:$0xff]
    %v46 = vld [vmem:[#allocation2] sm:$0xff]
    %v47 = vld [vmem:[#allocation2 + $0x8] sm:$0x3]
    %v48 = vld [vmem:[%s2] sm:$0x1]
    %v50 = vlaneseq
    %v51 = vshrl.u32 %v50, 7
    %v52 = vsub.s32 0, %v51
    %v53 = vrot.slane %v48, %v52
    %vm55 = vcmask 80896
    %v57 = vsel %vm55, %v44, 0
    %v60 = vsel %vm55, %v45, 0
    %vm62 = vcmask 1041408
    %v64 = vsel %vm62, %v47, 0
    %66 = vmatprep.subr.mxu0 0.0
    %67 = vmatpush1.msra.mxu0 0.0
    %68 = vmatprep.subr.mxu0 0.0
    %69 = vmatpush1.msra.mxu0 0.0
    %70 = vmatprep.subr.mxu0 0.0
    %71 = vmatpush1.msra.mxu0 0.0
    %72 = vmatprep.subr.mxu0 0.0
    %73 = vmatpush1.msra.mxu0 0.0
    %74 = vmatprep.subr.mxu0 0.0
    %75 = vmatpush1.msra.mxu0 0.0
    %76 = vmatprep.subr.mxu0 0.0
    %77 = vmatpush1.msra.mxu0 0.0
    %78 = vmatprep.subr.mxu0 0.0
    %79 = vmatpush1.msra.mxu0 0.0
    %80 = vmatprep.subr.mxu0 0.0
    %81 = vmatpush1.msra.mxu0 0.0
    %82 = vmatprep.subr.mxu0 0.0
    %83 = vmatpush1.msra.mxu0 0.0
    %84 = vmatprep.subr.mxu0 0.0
    %85 = vmatpush1.msra.mxu0 0.0
    %86 = vmatprep.subr.mxu0 0.0
    %87 = vmatpush1.msra.mxu0 0.0
    %88 = vmatprep.subr.mxu0 0.0
    %89 = vmatpush1.msra.mxu0 0.0
    %90 = vmatprep.subr.mxu0 0.0
    %91 = vmatpush1.msra.mxu0 0.0
    %92 = vmatprep.subr.mxu0 0.0
    %93 = vmatpush1.msra.mxu0 0.0
    %94 = vmatprep.subr.mxu0 0.0
    %95 = vmatpush1.msra.mxu0 %v64
    %96 = vmatprep.subr.mxu0 0.0
    %97 = vmatpush1.msra.mxu0 %v46
    %98 = vmatprep.subr.mxu0 0.0
    %99 = vmatpush2.msra.mxu0 0.0
    %100 = vmatprep.subr.mxu0 0.0
    %101 = vmatpush2.msra.mxu0 0.0
    %102 = vmatprep.subr.mxu0 0.0
    %103 = vmatpush2.msra.mxu0 0.0
    %104 = vmatprep.subr.mxu0 0.0
    %105 = vmatpush2.msra.mxu0 0.0
    %106 = vmatprep.subr.mxu0 0.0
    %107 = vmatpush2.msra.mxu0 0.0
    %108 = vmatprep.subr.mxu0 0.0
    %109 = vmatpush2.msra.mxu0 0.0
    %110 = vmatprep.subr.mxu0 0.0
    %111 = vmatpush2.msra.mxu0 0.0
    %112 = vmatprep.subr.mxu0 0.0
    %113 = vmatpush2.msra.mxu0 0.0
    %114 = vmatprep.subr.mxu0 0.0
    %115 = vmatpush2.msra.mxu0 0.0
    %116 = vmatprep.subr.mxu0 0.0
    %117 = vmatpush2.msra.mxu0 0.0
    %118 = vmatprep.subr.mxu0 0.0
    %119 = vmatpush2.msra.mxu0 0.0
    %120 = vmatprep.subr.mxu0 0.0
    %121 = vmatpush2.msra.mxu0 0.0
    %122 = vmatprep.subr.mxu0 0.0
    %123 = vmatpush2.msra.mxu0 0.0
    %124 = vmatprep.subr.mxu0 0.0
    %125 = vmatpush2.msra.mxu0 0.0
    %126 = vmatprep.subr.mxu0 0.0
    %127 = vmatpush2.msra.mxu0 0.0
    %128 = vmatprep.subr.mxu0 0.0
    %129 = vmatpush2.msra.mxu0 0.0
    %130 = vmatprep.mubr.f32.mxu0 0.0
    %131 = vmatmul.mubr.f32.gmra.mxu0 %v57
    %v132 = vpop.f32.mrf.mxu0
    %v133 = vadd.f32 %v53, %v132
    %v134 = vpop.f32.mrf.mxu0
    %135 = vmatprep.mubr.f32.mxu0 0.0
    %136 = vmatmul.mubr.f32.gmra.mxu0 %v60
    %v137 = vpop.f32.mrf.mxu0
    %v138 = vadd.f32 %v53, %v137
    %v139 = vpop.f32.mrf.mxu0
    %140 = vdwg.mxu0
    %v141 = vmax.f32 %v133, 0.0
    %v142 = vmax.f32 %v138, 0.0
    %v143 = vld [vmem:[%s3] sm:$0xff]
    %v144 = vld [vmem:[%s3 + $0x8] sm:$0xff]
    %v145 = vld [vmem:[%s3 + $0x10] sm:$0xff]
    %v146 = vld [vmem:[%s3 + $0x18] sm:$0xff]
    %v147 = vld [vmem:[%s4] sm:$0x1]
    %v149 = vlaneseq
    %v150 = vshrl.u32 %v149, 7
    %v151 = vsub.s32 0, %v150
    %v152 = vrot.slane %v147, %v151
    %vm154 = vcmask 261120
    %v156 = vsel %vm154, %v141, 0
    %v159 = vsel %vm154, %v142, 0
    %161 = vmatprep.subr.mxu0 0.0
    %162 = vmatpush1.msra.mxu0 0.0
    %163 = vmatprep.subr.mxu0 0.0
    %164 = vmatpush1.msra.mxu0 0.0
    %165 = vmatprep.subr.mxu0 0.0
    %166 = vmatpush1.msra.mxu0 0.0
    %167 = vmatprep.subr.mxu0 0.0
    %168 = vmatpush1.msra.mxu0 0.0
    %169 = vmatprep.subr.mxu0 0.0
    %170 = vmatpush1.msra.mxu0 0.0
    %171 = vmatprep.subr.mxu0 0.0
    %172 = vmatpush1.msra.mxu0 0.0
    %173 = vmatprep.subr.mxu0 0.0
    %174 = vmatpush1.msra.mxu0 0.0
    %175 = vmatprep.subr.mxu0 0.0
    %176 = vmatpush1.msra.mxu0 0.0
    %177 = vmatprep.subr.mxu0 0.0
    %178 = vmatpush1.msra.mxu0 0.0
    %179 = vmatprep.subr.mxu0 0.0
    %180 = vmatpush1.msra.mxu0 0.0
    %181 = vmatprep.subr.mxu0 0.0
    %182 = vmatpush1.msra.mxu0 0.0
    %183 = vmatprep.subr.mxu0 0.0
    %184 = vmatpush1.msra.mxu0 0.0
    %185 = vmatprep.subr.mxu0 0.0
    %186 = vmatpush1.msra.mxu0 %v146
    %187 = vmatprep.subr.mxu0 0.0
    %188 = vmatpush1.msra.mxu0 %v145
    %189 = vmatprep.subr.mxu0 0.0
    %190 = vmatpush1.msra.mxu0 %v144
    %191 = vmatprep.subr.mxu0 0.0
    %192 = vmatpush1.msra.mxu0 %v143
    %193 = vmatprep.subr.mxu0 0.0
    %194 = vmatpush2.msra.mxu0 0.0
    %195 = vmatprep.subr.mxu0 0.0
    %196 = vmatpush2.msra.mxu0 0.0
    %197 = vmatprep.subr.mxu0 0.0
    %198 = vmatpush2.msra.mxu0 0.0
    %199 = vmatprep.subr.mxu0 0.0
    %200 = vmatpush2.msra.mxu0 0.0
    %201 = vmatprep.subr.mxu0 0.0
    %202 = vmatpush2.msra.mxu0 0.0
    %203 = vmatprep.subr.mxu0 0.0
    %204 = vmatpush2.msra.mxu0 0.0
    %205 = vmatprep.subr.mxu0 0.0
    %206 = vmatpush2.msra.mxu0 0.0
    %207 = vmatprep.subr.mxu0 0.0
    %208 = vmatpush2.msra.mxu0 0.0
    %209 = vmatprep.subr.mxu0 0.0
    %210 = vmatpush2.msra.mxu0 0.0
    %211 = vmatprep.subr.mxu0 0.0
    %212 = vmatpush2.msra.mxu0 0.0
    %213 = vmatprep.subr.mxu0 0.0
    %214 = vmatpush2.msra.mxu0 0.0
    %215 = vmatprep.subr.mxu0 0.0
    %216 = vmatpush2.msra.mxu0 0.0
    %217 = vmatprep.subr.mxu0 0.0
    %218 = vmatpush2.msra.mxu0 0.0
    %219 = vmatprep.subr.mxu0 0.0
    %220 = vmatpush2.msra.mxu0 0.0
    %221 = vmatprep.subr.mxu0 0.0
    %222 = vmatpush2.msra.mxu0 0.0
    %223 = vmatprep.subr.mxu0 0.0
    %224 = vmatpush2.msra.mxu0 0.0
    %225 = vmatprep.mubr.f32.mxu0 0.0
    %226 = vmatmul.mubr.f32.gmra.mxu0 %v156
    %v227 = vpop.f32.mrf.mxu0
    %v228 = vadd.f32 %v152, %v227
    %v229 = vpop.f32.mrf.mxu0
    %230 = vmatprep.mubr.f32.mxu0 0.0
    %231 = vmatmul.mubr.f32.gmra.mxu0 %v159
    %v232 = vpop.f32.mrf.mxu0
    %v233 = vadd.f32 %v152, %v232
    %v234 = vpop.f32.mrf.mxu0
    %235 = vdwg.mxu0
    %v236 = vmax.f32 %v228, 0.0
    %v237 = vmax.f32 %v233, 0.0
    %v238 = vld [vmem:[%s5] sm:$0xff]
    %v239 = vld [vmem:[%s5 + $0x8] sm:$0xff]
    %v240 = vld [vmem:[%s5 + $0x10] sm:$0xff]
    %v241 = vld [vmem:[%s5 + $0x18] sm:$0xff]
    %v242 = vld [vmem:[%s6] sm:$0x1]
    %v244 = vlaneseq
    %v245 = vshrl.u32 %v244, 7
    %v246 = vsub.s32 0, %v245
    %v247 = vrot.slane %v242, %v246
    %v250 = vsel %vm154, %v236, 0
    %v253 = vsel %vm154, %v237, 0
    %255 = vmatprep.subr.mxu0 0.0
    %256 = vmatpush1.msra.mxu0 0.0
    %257 = vmatprep.subr.mxu0 0.0
    %258 = vmatpush1.msra.mxu0 0.0
    %259 = vmatprep.subr.mxu0 0.0
    %260 = vmatpush1.msra.mxu0 0.0
    %261 = vmatprep.subr.mxu0 0.0
    %262 = vmatpush1.msra.mxu0 0.0
    %263 = vmatprep.subr.mxu0 0.0
    %264 = vmatpush1.msra.mxu0 0.0
    %265 = vmatprep.subr.mxu0 0.0
    %266 = vmatpush1.msra.mxu0 0.0
    %267 = vmatprep.subr.mxu0 0.0
    %268 = vmatpush1.msra.mxu0 0.0
    %269 = vmatprep.subr.mxu0 0.0
    %270 = vmatpush1.msra.mxu0 0.0
    %271 = vmatprep.subr.mxu0 0.0
    %272 = vmatpush1.msra.mxu0 0.0
    %273 = vmatprep.subr.mxu0 0.0
    %274 = vmatpush1.msra.mxu0 0.0
    %275 = vmatprep.subr.mxu0 0.0
    %276 = vmatpush1.msra.mxu0 0.0
    %277 = vmatprep.subr.mxu0 0.0
    %278 = vmatpush1.msra.mxu0 0.0
    %279 = vmatprep.subr.mxu0 0.0
    %280 = vmatpush1.msra.mxu0 %v241
    %281 = vmatprep.subr.mxu0 0.0
    %282 = vmatpush1.msra.mxu0 %v240
    %283 = vmatprep.subr.mxu0 0.0
    %284 = vmatpush1.msra.mxu0 %v239
    %285 = vmatprep.subr.mxu0 0.0
    %286 = vmatpush1.msra.mxu0 %v238
    %287 = vmatprep.subr.mxu0 0.0
    %288 = vmatpush2.msra.mxu0 0.0
    %289 = vmatprep.subr.mxu0 0.0
    %290 = vmatpush2.msra.mxu0 0.0
    %291 = vmatprep.subr.mxu0 0.0
    %292 = vmatpush2.msra.mxu0 0.0
    %293 = vmatprep.subr.mxu0 0.0
    %294 = vmatpush2.msra.mxu0 0.0
    %295 = vmatprep.subr.mxu0 0.0
    %296 = vmatpush2.msra.mxu0 0.0
    %297 = vmatprep.subr.mxu0 0.0
    %298 = vmatpush2.msra.mxu0 0.0
    %299 = vmatprep.subr.mxu0 0.0
    %300 = vmatpush2.msra.mxu0 0.0
    %301 = vmatprep.subr.mxu0 0.0
    %302 = vmatpush2.msra.mxu0 0.0
    %303 = vmatprep.subr.mxu0 0.0
    %304 = vmatpush2.msra.mxu0 0.0
    %305 = vmatprep.subr.mxu0 0.0
    %306 = vmatpush2.msra.mxu0 0.0
    %307 = vmatprep.subr.mxu0 0.0
    %308 = vmatpush2.msra.mxu0 0.0
    %309 = vmatprep.subr.mxu0 0.0
    %310 = vmatpush2.msra.mxu0 0.0
    %311 = vmatprep.subr.mxu0 0.0
    %312 = vmatpush2.msra.mxu0 0.0
    %313 = vmatprep.subr.mxu0 0.0
    %314 = vmatpush2.msra.mxu0 0.0
    %315 = vmatprep.subr.mxu0 0.0
    %316 = vmatpush2.msra.mxu0 0.0
    %317 = vmatprep.subr.mxu0 0.0
    %318 = vmatpush2.msra.mxu0 0.0
    %319 = vmatprep.mubr.f32.mxu0 0.0
    %320 = vmatmul.mubr.f32.gmra.mxu0 %v250
    %v321 = vpop.f32.mrf.mxu0
    %v322 = vadd.f32 %v247, %v321
    %v323 = vpop.f32.mrf.mxu0
    %324 = vmatprep.mubr.f32.mxu0 0.0
    %325 = vmatmul.mubr.f32.gmra.mxu0 %v253
    %v326 = vpop.f32.mrf.mxu0
    %v327 = vadd.f32 %v247, %v326
    %v328 = vpop.f32.mrf.mxu0
    %329 = vdwg.mxu0
    %v330 = vtanh.pop %v322
    %v331 = vtanh.pop %v327
    %v332 = vld [vmem:[%s7] sm:$0x1]
    %v334 = vlaneseq
    %v335 = vshrl.u32 %v334, 7
    %v336 = vsub.s32 0, %v335
    %v337 = vrot.slane %v332, %v336
    %v339 = vmul.f32 %v330, %v337
    %v340 = vmul.f32 %v331, %v337
    %vm341 = vcmask 97280
    %342 = vst.msk [vmem:[#allocation5] sm:$0xff] %vm341, %v339
    %343 = vst.msk [vmem:[#allocation5 + $0x8] sm:$0xff] %vm341, %v340
    // Predicated region
    $region38: #{tpu_custom_call.1} parent=1 // pred_check
      _
    $region39: #{tpu_custom_call.1} parent=1 // pred_check_branch
      %345 = sbr.rel (0) target = $region41
    $region40: #{tpu_custom_call.1} parent=1 // pred_region
      %s347 = ssub.s32 256, 256
      %348 = vsyncadd [#allocation4], %s347
      %s349 = sshll.u32 [#allocation5], 4
      %s350 = int_to_ptr.vmem [resolvable:$true] %s349
      %355 = dma.vmem_to_hbm [thread:$0]  %s350, 256, %s8, [#allocation4], 128, 128, 8
    $region41: #{tpu_custom_call.1} parent=1 // pred_fallthru
      _
    // Predicated region
    $region42: #{tpu_custom_call.1} parent=1 // pred_check
      _
    $region43: #{tpu_custom_call.1} parent=1 // pred_check_branch
      %357 = sbr.rel (0) target = $region45
    $region44: #{tpu_custom_call.1} parent=1 // pred_region
      %358 = dma.done [#allocation4], 256
    $region45: #{tpu_custom_call.1} parent=1 // pred_fallthru
      _
    %359 = vsyncpa [#allocation3], 1
    %360 = vsyncpa [#allocation4], 1

</llo_original>
